<compile_context>
chip_gen: v5e
topology: v5e:2x2
jax: 0.10.0
libtpu: 0.0.40
codegen_flags: <defaults>
</compile_context>

<pallas_src>
import jax
import jax.numpy as jnp
from jax.experimental import pallas as pl
from jax.experimental.pallas import tpu as pltpu


def _ensemble_fused_kernel(x_ref, w1_ref, b1_ref, w2_ref, b2_ref, out_ref):
    """All ensemble members in one body: two lane-wide MXU matmuls + one ReLU."""
    x = x_ref[...]                                     # (B, D)
    # Layer 1, all members at once: (B, D) @ (D, M*H) -> (B, M*H)
    h = jnp.dot(x, w1_ref[...], preferred_element_type=jnp.float32) + b1_ref[...]
    h = jnp.maximum(h, 0.0)                            # ReLU on VPU
    # Layer 2, block-diagonal weights: (B, M*H) @ (M*H, M*C) -> (B, M*C)
    logits = jnp.dot(h, w2_ref[...], preferred_element_type=jnp.float32) + b2_ref[...]
    out_ref[...] = logits.astype(out_ref.dtype)


def complete_ensemble_forward(x, w1, b1, w2, b2):
    """Runs all M ensemble members; returns list of per-model logits (B, C).

    x  : (B, D)        w1 : (M, D, H)    b1 : (M, 1, H)
    w2 : (M, H, C)     b2 : (M, 1, C)
    """
    M, D, H = w1.shape
    C = w2.shape[-1]
    B = x.shape[0]

    # --- Fuse weights across the ensemble dimension (layout plumbing, host/XLA side) ---
    # Layer 1: columns ordered member-major -> column j corresponds to (m, h), j = m*H + h.
    w1_all = jnp.transpose(w1, (1, 0, 2)).reshape(D, M * H)   # (D, M*H)
    b1_all = b1.reshape(1, M * H)                             # (1, M*H)

    # Layer 2: block-diagonal so one matmul computes every member's logits.
    w2_blk = jnp.zeros((M * H, M * C), dtype=w2.dtype)
    for m in range(M):
        w2_blk = w2_blk.at[m * H:(m + 1) * H, m * C:(m + 1) * C].set(w2[m])
    b2_all = b2.reshape(1, M * C)                             # (1, M*C)

    # Single-invocation kernel: whole operands resident in VMEM, lane-dense output.
    vmem_spec = pl.BlockSpec(memory_space=pltpu.MemorySpace.VMEM)
    out = pl.pallas_call(
        _ensemble_fused_kernel,
        out_shape=jax.ShapeDtypeStruct((B, M * C), jnp.float32),
        in_specs=[vmem_spec] * 5,
        out_specs=vmem_spec,
    )(x, w1_all, b1_all, w2_blk, b2_all)

    # CompleteEnsemble.forward returns a Python list of per-model logits.
    # (Callers that can consume the (B, M*C) slab directly should prefer `out`.)
    return [out[:, m * C:(m + 1) * C] for m in range(M)]


def _reference_forward(x, w1, b1, w2, b2):
    M = w1.shape[0]
    outs = []
    for m in range(M):
        h = jnp.maximum(x @ w1[m] + b1[m], 0.0)
        outs.append(h @ w2[m] + b2[m])
    return outs


if __name__ == "__main__":
    # Small deterministic shapes consistent with the MLP-ensemble forward.
    M = 3     # number of ensemble members
    B = 2     # batch
    D = 32    # input features
    H = 32    # hidden units
    C = 4     # number of classes

    key = jax.random.PRNGKey(0)
    kx, kw1, kb1, kw2, kb2 = jax.random.split(key, 5)
    x = jax.random.normal(kx, (B, D), dtype=jnp.float32)
    w1 = jax.random.normal(kw1, (M, D, H), dtype=jnp.float32) * 0.1
    b1 = jax.random.normal(kb1, (M, 1, H), dtype=jnp.float32) * 0.1
    w2 = jax.random.normal(kw2, (M, H, C), dtype=jnp.float32) * 0.1
    b2 = jax.random.normal(kb2, (M, 1, C), dtype=jnp.float32) * 0.1

    logits_list = complete_ensemble_forward(x, w1, b1, w2, b2)
    logits_list = [jax.block_until_ready(l) for l in logits_list]

    ref_list = _reference_forward(x, w1, b1, w2, b2)
    for got, ref in zip(logits_list, ref_list):
        assert got.shape == (B, C)
        assert jnp.allclose(got, ref, atol=1e-4, rtol=1e-4)

    print("KERNEL_OK")
</pallas_src>

<mosaic_0001>
module attributes {stable_mosaic.version = 11 : i64} {
  func.func @_ensemble_fused_kernel(%arg0: memref<2x32xf32, #tpu.memory_space<vmem>>, %arg1: memref<32x96xf32, #tpu.memory_space<vmem>>, %arg2: memref<1x96xf32, #tpu.memory_space<vmem>>, %arg3: memref<96x12xf32, #tpu.memory_space<vmem>>, %arg4: memref<1x12xf32, #tpu.memory_space<vmem>>, %arg5: memref<2x12xf32, #tpu.memory_space<vmem>>) attributes {dimension_semantics = [], scalar_prefetch = 0 : i64, scratch_operands = 0 : i64, tpu.core_type = #tpu.core_type<tc>} {
    %c0 = arith.constant 0 : index
    %c0_0 = arith.constant 0 : index
    %0 = vector.load %arg0[%c0, %c0_0] : memref<2x32xf32, #tpu.memory_space<vmem>>, vector<2x32xf32>
    %c0_1 = arith.constant 0 : index
    %c0_2 = arith.constant 0 : index
    %1 = vector.load %arg1[%c0_1, %c0_2] : memref<32x96xf32, #tpu.memory_space<vmem>>, vector<32x96xf32>
    %cst = arith.constant dense<0.000000e+00> : vector<2x96xf32>
    %2 = tpu.matmul %0, %1, %cst {dimension_numbers = #tpu.dot_dimension_numbers<[1], [0], [0], [1], [0, 0, 1, 1], [], []>} : vector<2x32xf32>, vector<32x96xf32>, vector<2x96xf32> -> vector<2x96xf32>
    %c0_3 = arith.constant 0 : index
    %c0_4 = arith.constant 0 : index
    %3 = vector.load %arg2[%c0_3, %c0_4] : memref<1x96xf32, #tpu.memory_space<vmem>>, vector<1x96xf32>
    %4 = vector.broadcast %3 : vector<1x96xf32> to vector<2x96xf32>
    %5 = arith.addf %2, %4 : vector<2x96xf32>
    %cst_5 = arith.constant 0.000000e+00 : f32
    %6 = vector.broadcast %cst_5 : f32 to vector<2x96xf32>
    %7 = arith.maximumf %5, %6 : vector<2x96xf32>
    %c0_6 = arith.constant 0 : index
    %c0_7 = arith.constant 0 : index
    %8 = vector.load %arg3[%c0_6, %c0_7] : memref<96x12xf32, #tpu.memory_space<vmem>>, vector<96x12xf32>
    %cst_8 = arith.constant dense<0.000000e+00> : vector<2x12xf32>
    %9 = tpu.matmul %7, %8, %cst_8 {dimension_numbers = #tpu.dot_dimension_numbers<[1], [0], [0], [1], [0, 0, 1, 1], [], []>} : vector<2x96xf32>, vector<96x12xf32>, vector<2x12xf32> -> vector<2x12xf32>
    %c0_9 = arith.constant 0 : index
    %c0_10 = arith.constant 0 : index
    %10 = vector.load %arg4[%c0_9, %c0_10] : memref<1x12xf32, #tpu.memory_space<vmem>>, vector<1x12xf32>
    %11 = vector.broadcast %10 : vector<1x12xf32> to vector<2x12xf32>
    %12 = arith.addf %9, %11 : vector<2x12xf32>
    %c0_11 = arith.constant 0 : index
    %c0_12 = arith.constant 0 : index
    %13 = vector.load %arg5[%c0_11, %c0_12] : memref<2x12xf32, #tpu.memory_space<vmem>>, vector<2x12xf32>
    tpu.vector_store %arg5[%c0_11, %c0_12], %12 {strides = array<i32>} : memref<2x12xf32, #tpu.memory_space<vmem>>, vector<2x12xf32>,
    return
  }
}

</mosaic_0001>

<llo_original>
// kernel: tpu_custom_call.1
$region0: #{tpu_custom_call.1}
  #allocation0 [shape = 'u32[]', space=smem, size = 0x4, offset = 0x4, fixed_abs, tag = 'smem constant byte address 0x4 - core index']
  #allocation1 [shape = 'u32[72,128]{1,0:T(1,128)}', space=vmem, size = 0x9000, scoped, tag = 'internal scratch']
  %s0 = inlined_call_operand.vmem [shape: f32[2,32], index: 0, kind: input, shape index: {}]
  %s1 = inlined_call_operand.vmem [shape: f32[32,96], index: 1, kind: input, shape index: {}]
  %s2 = inlined_call_operand.vmem [shape: f32[1,96], index: 2, kind: input, shape index: {}]
  %s3 = inlined_call_operand.vmem [shape: f32[96,12], index: 3, kind: input, shape index: {}]
  %s4 = inlined_call_operand.vmem [shape: f32[1,12], index: 4, kind: input, shape index: {}]
  %s5 = inlined_call_operand.hbm [shape: f32[2,12], index: 5, kind: output, shape index: {}]
  %s6 = sld [smem:[#allocation0]]
  $region30: #{tpu_custom_call.1} parent=0
    _
  %s8 = ssub.s32 1, %s6
  %s9 = scalar_select 0, %s8, %s6
  $region1: #{tpu_custom_call.1} parent=0
    #allocation2 [shape = 'u8[1024]{0}', space=vmem, size = 0x400, scoped, tag = 'output window, operand 0, single buffered']
    #allocation3 [shape = 's32[1]{0}', space=sflag, size = 0x4, scoped, tag = 'scoped memory for tpu_custom_call.1']
    %10 = vsyncpa [#allocation3], 0
    // Predicated region
    $region2: #{tpu_custom_call.1} parent=1 // pred_check
      _
    $region3: #{tpu_custom_call.1} parent=1 // pred_check_branch
      %12 = sbr.rel (0) target = $region5
    $region4: #{tpu_custom_call.1} parent=1 // pred_region
      _
    $region5: #{tpu_custom_call.1} parent=1 // pred_fallthru
      _
    // Predicated region
    $region6: #{tpu_custom_call.1} parent=1 // pred_check
      _
    $region7: #{tpu_custom_call.1} parent=1 // pred_check_branch
      %14 = sbr.rel (0) target = $region9
    $region8: #{tpu_custom_call.1} parent=1 // pred_region
      _
    $region9: #{tpu_custom_call.1} parent=1 // pred_fallthru
      _
    // Predicated region
    $region10: #{tpu_custom_call.1} parent=1 // pred_check
      _
    $region11: #{tpu_custom_call.1} parent=1 // pred_check_branch
      %16 = sbr.rel (0) target = $region13
    $region12: #{tpu_custom_call.1} parent=1 // pred_region
      _
    $region13: #{tpu_custom_call.1} parent=1 // pred_fallthru
      _
    // Predicated region
    $region14: #{tpu_custom_call.1} parent=1 // pred_check
      _
    $region15: #{tpu_custom_call.1} parent=1 // pred_check_branch
      %18 = sbr.rel (0) target = $region17
    $region16: #{tpu_custom_call.1} parent=1 // pred_region
      _
    $region17: #{tpu_custom_call.1} parent=1 // pred_fallthru
      _
    // Predicated region
    $region18: #{tpu_custom_call.1} parent=1 // pred_check
      _
    $region19: #{tpu_custom_call.1} parent=1 // pred_check_branch
      %20 = sbr.rel (0) target = $region21
    $region20: #{tpu_custom_call.1} parent=1 // pred_region
      _
    $region21: #{tpu_custom_call.1} parent=1 // pred_fallthru
      _
    %v21 = vld [vmem:[%s0] sm:$0x3]
    %v22 = vld [vmem:[%s1] sm:$0xff]
    %v23 = vld [vmem:[%s1 + $0x8] sm:$0xff]
    %v24 = vld [vmem:[%s1 + $0x10] sm:$0xff]
    %v25 = vld [vmem:[%s1 + $0x18] sm:$0xff]
    %v26 = vld [vmem:[%s2] sm:$0x1]
    %v28 = vperm.slane %v26, 0
    %vm30 = vcmask 261120
    %v32 = vsel %vm30, %v21, 0
    %34 = vmatpush.msra.mxu0 0.0
    %35 = vmatpush.msra.mxu0 0.0
    %36 = vmatpush.msra.mxu0 0.0
    %37 = vmatpush.msra.mxu0 0.0
    %38 = vmatpush.msra.mxu0 0.0
    %39 = vmatpush.msra.mxu0 0.0
    %40 = vmatpush.msra.mxu0 0.0
    %41 = vmatpush.msra.mxu0 0.0
    %42 = vmatpush.msra.mxu0 0.0
    %43 = vmatpush.msra.mxu0 0.0
    %44 = vmatpush.msra.mxu0 0.0
    %45 = vmatpush.msra.mxu0 0.0
    %46 = vmatpush.msra.mxu0 %v25
    %47 = vmatpush.msra.mxu0 %v24
    %48 = vmatpush.msra.mxu0 %v23
    %49 = vmatpush.msra.mxu0 %v22
    %50 = vmatmul.f32.gmra.mxu0 %v32
    %v51 = vpop.f32.mrf.mxu0
    %v52 = vadd.f32 %v28, %v51
    %53 = vdwg.mxu0
    %v54 = vmax.f32 %v52, 0.0
    %v55 = vld [vmem:[%s3] sm:$0xff]
    %v56 = vld [vmem:[%s3 + $0x8] sm:$0xff]
    %v57 = vld [vmem:[%s3 + $0x10] sm:$0xff]
    %v58 = vld [vmem:[%s3 + $0x18] sm:$0xff]
    %v59 = vld [vmem:[%s3 + $0x20] sm:$0xff]
    %v60 = vld [vmem:[%s3 + $0x28] sm:$0xff]
    %v61 = vld [vmem:[%s3 + $0x30] sm:$0xff]
    %v62 = vld [vmem:[%s3 + $0x38] sm:$0xff]
    %v63 = vld [vmem:[%s3 + $0x40] sm:$0xff]
    %v64 = vld [vmem:[%s3 + $0x48] sm:$0xff]
    %v65 = vld [vmem:[%s3 + $0x50] sm:$0xff]
    %v66 = vld [vmem:[%s3 + $0x58] sm:$0xff]
    %v67 = vld [vmem:[%s4] sm:$0x1]
    %v69 = vperm.slane %v67, 0
    %vm71 = vcmask 785408
    %v73 = vsel %vm71, %v54, 0
    %75 = vmatpush.msra.mxu0 0.0
    %76 = vmatpush.msra.mxu0 0.0
    %77 = vmatpush.msra.mxu0 0.0
    %78 = vmatpush.msra.mxu0 0.0
    %79 = vmatpush.msra.mxu0 %v66
    %80 = vmatpush.msra.mxu0 %v65
    %81 = vmatpush.msra.mxu0 %v64
    %82 = vmatpush.msra.mxu0 %v63
    %83 = vmatpush.msra.mxu0 %v62
    %84 = vmatpush.msra.mxu0 %v61
    %85 = vmatpush.msra.mxu0 %v60
    %86 = vmatpush.msra.mxu0 %v59
    %87 = vmatpush.msra.mxu0 %v58
    %88 = vmatpush.msra.mxu0 %v57
    %89 = vmatpush.msra.mxu0 %v56
    %90 = vmatpush.msra.mxu0 %v55
    %91 = vmatmul.f32.gmra.mxu0 %v73
    %v92 = vpop.f32.mrf.mxu0
    %v93 = vadd.f32 %v69, %v92
    %94 = vdwg.mxu0
    %vm95 = vcmask 91136
    %96 = vst.msk [vmem:[#allocation2] sm:$0x3] %vm95, %v93
    // Predicated region
    $region22: #{tpu_custom_call.1} parent=1 // pred_check
      _
    $region23: #{tpu_custom_call.1} parent=1 // pred_check_branch
      %98 = sbr.rel (0) target = $region25
    $region24: #{tpu_custom_call.1} parent=1 // pred_region
      %100 = vsyncadd [#allocation3], 0
      %s102 = sshll.u32 [#allocation2], 4
      %s103 = int_to_ptr.vmem [resolvable:$true] %s102
      %s104 = sshll.u32 %s5, 4
      %s105 = int_to_ptr.hbm [resolvable:$true] %s104
      %107 = dma.vmem_to_hbm [thread:$0]  %s103, 32, %s105, [#allocation3]
    $region25: #{tpu_custom_call.1} parent=1 // pred_fallthru
      _
    // Predicated region
    $region26: #{tpu_custom_call.1} parent=1 // pred_check
      _
    $region27: #{tpu_custom_call.1} parent=1 // pred_check_branch
      %109 = sbr.rel (0) target = $region29
    $region28: #{tpu_custom_call.1} parent=1 // pred_region
      %111 = dma.done [#allocation3], 32
    $region29: #{tpu_custom_call.1} parent=1 // pred_fallthru
      _
    %112 = vsyncpa [#allocation3], 1

</llo_original>
